<compile_context>
chip_gen: v6e
topology: v6e:2x2x1
jax: 0.10.0
libtpu: 0.0.40
codegen_flags: <defaults>
</compile_context>

<pallas_src>
import jax
import jax.numpy as jnp
from jax.experimental import pallas as pl
from jax.experimental.pallas import tpu as pltpu


def _round_up(x, m):
    return ((x + m - 1) // m) * m


def mlp_kernel(x_ref, w1_ref, b1_ref, w2_ref, b2_ref, o_ref):
    # ----- layer1: x @ W1 + b1, then sigmoid (all f32) -----
    h = jnp.dot(x_ref[...], w1_ref[...],
                preferred_element_type=jnp.float32) + b1_ref[...]
    h = jax.nn.sigmoid(h)

    # ----- layer2: h @ W2 + b2 (logical, unpadded out columns) -----
    logits = jnp.dot(h, w2_ref[...],
                     preferred_element_type=jnp.float32) + b2_ref[...]

    # ----- numerically-stable softmax over the feature axis (dim=1) -----
    m = jnp.max(logits, axis=-1, keepdims=True)
    e = jnp.exp(logits - m)
    denom = jnp.sum(e, axis=-1, keepdims=True)
    o_ref[...] = (e / denom).astype(o_ref.dtype)


def mlp_forward(x, w1, b1, w2, b2, *, block_m=1024):
    """x: [batch, in], w1: [in, hidden], b1: [1, hidden],
       w2: [hidden, out], b2: [1, out] -> [batch, out] softmax probabilities."""
    batch, in_features = x.shape
    hidden = w1.shape[1]
    out_features = w2.shape[1]

    if batch <= block_m:
        # Single full-batch tile: block dims equal full array dims, so no
        # (8,128) divisibility requirement, no padding, no post-slice.
        tm = batch
        padded_batch = batch
    else:
        tm = block_m                       # multiple of 8
        padded_batch = _round_up(batch, tm)
        if padded_batch != batch:
            x = jnp.pad(x, ((0, padded_batch - batch), (0, 0)))

    grid = (padded_batch // tm,)

    out = pl.pallas_call(
        mlp_kernel,
        out_shape=jax.ShapeDtypeStruct((padded_batch, out_features), jnp.float32),
        grid=grid,
        in_specs=[
            pl.BlockSpec((tm, in_features), lambda i: (i, 0)),      # x: batch-tiled
            pl.BlockSpec((in_features, hidden), lambda i: (0, 0)),  # weights/biases
            pl.BlockSpec((1, hidden), lambda i: (0, 0)),            # stay VMEM-resident
            pl.BlockSpec((hidden, out_features), lambda i: (0, 0)),
            pl.BlockSpec((1, out_features), lambda i: (0, 0)),
        ],
        out_specs=pl.BlockSpec((tm, out_features), lambda i: (i, 0)),
        compiler_params=pltpu.CompilerParams(
            dimension_semantics=("parallel",),   # shard batch tiles across TCs (v7x)
        ),
    )(x, w1, b1, w2, b2)

    if padded_batch != batch:
        out = out[:batch]   # rows only; columns are already exact
    return out


def reference_forward(x, w1, b1, w2, b2):
    h = jax.nn.sigmoid(x @ w1 + b1)
    logits = h @ w2 + b2
    return jax.nn.softmax(logits, axis=1)


if __name__ == "__main__":
    # Sizes implied by the module: Iris-like input_size=4, hidden_size=16, output_size=3.
    batch, input_size, hidden_size, output_size = 8, 4, 16, 3

    key = jax.random.PRNGKey(0)
    kx, kw1, kb1, kw2, kb2 = jax.random.split(key, 5)

    x = jax.random.normal(kx, (batch, input_size), dtype=jnp.float32)

    # Deterministic parameter init (uniform, like PyTorch's default Linear init range).
    bound1 = 1.0 / (input_size ** 0.5)
    w1 = jax.random.uniform(kw1, (input_size, hidden_size), minval=-bound1,
                            maxval=bound1, dtype=jnp.float32)
    b1 = jax.random.uniform(kb1, (1, hidden_size), minval=-bound1,
                            maxval=bound1, dtype=jnp.float32)
    bound2 = 1.0 / (hidden_size ** 0.5)
    w2 = jax.random.uniform(kw2, (hidden_size, output_size), minval=-bound2,
                            maxval=bound2, dtype=jnp.float32)
    b2 = jax.random.uniform(kb2, (1, output_size), minval=-bound2,
                            maxval=bound2, dtype=jnp.float32)

    out = mlp_forward(x, w1, b1, w2, b2)
    jax.block_until_ready(out)

    ref = reference_forward(x, w1, b1, w2, b2)
    assert out.shape == (batch, output_size)
    assert jnp.allclose(out, ref, atol=1e-4, rtol=1e-4)
    assert jnp.allclose(jnp.sum(out, axis=1), jnp.ones((batch,)), atol=1e-4)

    print("KERNEL_OK")
</pallas_src>

<mosaic_0001>
module attributes {stable_mosaic.version = 11 : i64} {
  func.func @mlp_kernel(%arg0: i32, %arg1: memref<8x4xf32, #tpu.memory_space<vmem>>, %arg2: memref<4x16xf32, #tpu.memory_space<vmem>>, %arg3: memref<1x16xf32, #tpu.memory_space<vmem>>, %arg4: memref<16x3xf32, #tpu.memory_space<vmem>>, %arg5: memref<1x3xf32, #tpu.memory_space<vmem>>, %arg6: memref<8x3xf32, #tpu.memory_space<vmem>>) attributes {dimension_semantics = [#tpu.dimension_semantics<parallel>], iteration_bounds = array<i64: 1>, scalar_prefetch = 0 : i64, scratch_operands = 0 : i64, tpu.core_type = #tpu.core_type<tc>, window_params = [{transform_indices = @transform_0, window_bounds = array<i64: 8, 4>}, {pipeline_mode = #tpu.pipeline_mode<synchronous>, transform_indices = @transform_1, window_bounds = array<i64: 4, 16>}, {pipeline_mode = #tpu.pipeline_mode<synchronous>, transform_indices = @transform_2, window_bounds = array<i64: 1, 16>}, {pipeline_mode = #tpu.pipeline_mode<synchronous>, transform_indices = @transform_3, window_bounds = array<i64: 16, 3>}, {pipeline_mode = #tpu.pipeline_mode<synchronous>, transform_indices = @transform_4, window_bounds = array<i64: 1, 3>}, {transform_indices = @transform_5, window_bounds = array<i64: 8, 3>}]} {
    %c0 = arith.constant 0 : index
    %c0_0 = arith.constant 0 : index
    %0 = vector.load %arg1[%c0, %c0_0] : memref<8x4xf32, #tpu.memory_space<vmem>>, vector<8x4xf32>
    %c0_1 = arith.constant 0 : index
    %c0_2 = arith.constant 0 : index
    %1 = vector.load %arg2[%c0_1, %c0_2] : memref<4x16xf32, #tpu.memory_space<vmem>>, vector<4x16xf32>
    %cst = arith.constant dense<0.000000e+00> : vector<8x16xf32>
    %2 = tpu.matmul %0, %1, %cst {dimension_numbers = #tpu.dot_dimension_numbers<[1], [0], [0], [1], [0, 0, 1, 1], [], []>} : vector<8x4xf32>, vector<4x16xf32>, vector<8x16xf32> -> vector<8x16xf32>
    %c0_3 = arith.constant 0 : index
    %c0_4 = arith.constant 0 : index
    %3 = vector.load %arg3[%c0_3, %c0_4] : memref<1x16xf32, #tpu.memory_space<vmem>>, vector<1x16xf32>
    %4 = vector.broadcast %3 : vector<1x16xf32> to vector<8x16xf32>
    %5 = arith.addf %2, %4 : vector<8x16xf32>
    %6 = arith.negf %5 : vector<8x16xf32>
    %7 = math.exp %6 : vector<8x16xf32>
    %cst_5 = arith.constant 1.000000e+00 : f32
    %8 = vector.broadcast %cst_5 : f32 to vector<8x16xf32>
    %9 = arith.addf %8, %7 : vector<8x16xf32>
    %10 = arith.divf %8, %9 : vector<8x16xf32>
    %c0_6 = arith.constant 0 : index
    %c0_7 = arith.constant 0 : index
    %11 = vector.load %arg4[%c0_6, %c0_7] : memref<16x3xf32, #tpu.memory_space<vmem>>, vector<16x3xf32>
    %cst_8 = arith.constant dense<0.000000e+00> : vector<8x3xf32>
    %12 = tpu.matmul %10, %11, %cst_8 {dimension_numbers = #tpu.dot_dimension_numbers<[1], [0], [0], [1], [0, 0, 1, 1], [], []>} : vector<8x16xf32>, vector<16x3xf32>, vector<8x3xf32> -> vector<8x3xf32>
    %c0_9 = arith.constant 0 : index
    %c0_10 = arith.constant 0 : index
    %13 = vector.load %arg5[%c0_9, %c0_10] : memref<1x3xf32, #tpu.memory_space<vmem>>, vector<1x3xf32>
    %14 = vector.broadcast %13 : vector<1x3xf32> to vector<8x3xf32>
    %15 = arith.addf %12, %14 : vector<8x3xf32>
    %cst_11 = arith.constant dense<0xFF800000> : vector<8xf32>
    %16 = vector.multi_reduction <maximumf>, %15, %cst_11 [1] : vector<8x3xf32> to vector<8xf32>
    %17 = vector.shape_cast %16 : vector<8xf32> to vector<8x1xf32>
    %18 = vector.broadcast %17 : vector<8x1xf32> to vector<8x3xf32>
    %19 = arith.subf %15, %18 : vector<8x3xf32>
    %20 = math.exp %19 : vector<8x3xf32>
    %cst_12 = arith.constant dense<0.000000e+00> : vector<8xf32>
    %21 = vector.multi_reduction <add>, %20, %cst_12 [1] : vector<8x3xf32> to vector<8xf32>
    %22 = vector.shape_cast %21 : vector<8xf32> to vector<8x1xf32>
    %23 = vector.broadcast %22 : vector<8x1xf32> to vector<8x3xf32>
    %24 = arith.divf %20, %23 : vector<8x3xf32>
    %c0_13 = arith.constant 0 : index
    %c0_14 = arith.constant 0 : index
    %25 = vector.load %arg6[%c0_13, %c0_14] : memref<8x3xf32, #tpu.memory_space<vmem>>, vector<8x3xf32>
    tpu.vector_store %arg6[%c0_13, %c0_14], %24 {strides = array<i32>} : memref<8x3xf32, #tpu.memory_space<vmem>>, vector<8x3xf32>,
    return
  }
  func.func @transform_0(%arg0: i32) -> (i32, i32) {
    %c0_i32 = arith.constant 0 : i32
    %c0_i32_0 = arith.constant 0 : i32
    return %arg0, %c0_i32 : i32, i32
  }
  func.func @transform_1(%arg0: i32) -> (i32, i32) {
    %c0_i32 = arith.constant 0 : i32
    %c0_i32_0 = arith.constant 0 : i32
    %c0_i32_1 = arith.constant 0 : i32
    return %c0_i32, %c0_i32_0 : i32, i32
  }
  func.func @transform_2(%arg0: i32) -> (i32, i32) {
    %c0_i32 = arith.constant 0 : i32
    %c0_i32_0 = arith.constant 0 : i32
    %c0_i32_1 = arith.constant 0 : i32
    return %c0_i32, %c0_i32_0 : i32, i32
  }
  func.func @transform_3(%arg0: i32) -> (i32, i32) {
    %c0_i32 = arith.constant 0 : i32
    %c0_i32_0 = arith.constant 0 : i32
    %c0_i32_1 = arith.constant 0 : i32
    return %c0_i32, %c0_i32_0 : i32, i32
  }
  func.func @transform_4(%arg0: i32) -> (i32, i32) {
    %c0_i32 = arith.constant 0 : i32
    %c0_i32_0 = arith.constant 0 : i32
    %c0_i32_1 = arith.constant 0 : i32
    return %c0_i32, %c0_i32_0 : i32, i32
  }
  func.func @transform_5(%arg0: i32) -> (i32, i32) {
    %c0_i32 = arith.constant 0 : i32
    %c0_i32_0 = arith.constant 0 : i32
    return %arg0, %c0_i32 : i32, i32
  }
}

</mosaic_0001>

<llo_original>
// kernel: tpu_custom_call.1
$region0: #{tpu_custom_call.1}
  #allocation0 [shape = 'u32[]', space=smem, size = 0x4, offset = 0x4, fixed_abs, tag = 'smem constant byte address 0x4 - core index']
  #allocation1 [shape = 'u32[144,128]{1,0:T(1,128)}', space=vmem, size = 0x12000, scoped, tag = 'internal scratch']
  %s0 = inlined_call_operand.vmem [shape: f32[8,4], index: 0, kind: input, shape index: {}]
  %s1 = inlined_call_operand.vmem [shape: f32[4,16], index: 1, kind: input, shape index: {}]
  %s2 = inlined_call_operand.vmem [shape: f32[1,16], index: 2, kind: input, shape index: {}]
  %s3 = inlined_call_operand.vmem [shape: f32[16,3], index: 3, kind: input, shape index: {}]
  %s4 = inlined_call_operand.vmem [shape: f32[1,3], index: 4, kind: input, shape index: {}]
  %s5 = inlined_call_operand.vmem [shape: f32[8,3], index: 5, kind: output, shape index: {}]
  %s6 = sld [smem:[#allocation0]]
  $region30: #{tpu_custom_call.1} parent=0
    _
  %s8 = ssub.s32 1, %s6
  %s9 = scalar_select 0, %s8, %s6
  // Predicated region
  $region2: #{tpu_custom_call.1} parent=0 // pred_check
    _
  $region3: #{tpu_custom_call.1} parent=0 // pred_check_branch
    %11 = sbr.rel (0) target = $region5
  $region4: #{tpu_custom_call.1} parent=0 // pred_region
    _
  $region5: #{tpu_custom_call.1} parent=0 // pred_fallthru
    _
  // Predicated region
  $region6: #{tpu_custom_call.1} parent=0 // pred_check
    _
  $region7: #{tpu_custom_call.1} parent=0 // pred_check_branch
    %13 = sbr.rel (0) target = $region9
  $region8: #{tpu_custom_call.1} parent=0 // pred_region
    _
  $region9: #{tpu_custom_call.1} parent=0 // pred_fallthru
    _
  // Predicated region
  $region10: #{tpu_custom_call.1} parent=0 // pred_check
    _
  $region11: #{tpu_custom_call.1} parent=0 // pred_check_branch
    %15 = sbr.rel (0) target = $region13
  $region12: #{tpu_custom_call.1} parent=0 // pred_region
    _
  $region13: #{tpu_custom_call.1} parent=0 // pred_fallthru
    _
  // Predicated region
  $region14: #{tpu_custom_call.1} parent=0 // pred_check
    _
  $region15: #{tpu_custom_call.1} parent=0 // pred_check_branch
    %17 = sbr.rel (0) target = $region17
  $region16: #{tpu_custom_call.1} parent=0 // pred_region
    _
  $region17: #{tpu_custom_call.1} parent=0 // pred_fallthru
    _
  // Predicated region
  $region18: #{tpu_custom_call.1} parent=0 // pred_check
    _
  $region19: #{tpu_custom_call.1} parent=0 // pred_check_branch
    %19 = sbr.rel (0) target = $region21
  $region20: #{tpu_custom_call.1} parent=0 // pred_region
    _
  $region21: #{tpu_custom_call.1} parent=0 // pred_fallthru
    _
  %v20 = vld [vmem:[%s0] sm:$0xff]
  %v21 = vld [vmem:[%s1] sm:$0xf]
  %v22 = vld [vmem:[%s2] sm:$0x1]
  %v24 = vlaneseq
  %v25 = vshrl.u32 %v24, 7
  %v26 = vsub.s32 0, %v25
  %v27 = vrot.slane %v22, %v26
  %vm29 = vcmask 31744
  %v31 = vsel %vm29, %v20, 0
  %vm33 = vcmask 1043456
  %v35 = vsel %vm33, %v21, 0
  %37 = vmatprep.subr.mxu0 0.0
  %38 = vmatpush1.msra.mxu0 0.0
  %39 = vmatprep.subr.mxu0 0.0
  %40 = vmatpush1.msra.mxu0 0.0
  %41 = vmatprep.subr.mxu0 0.0
  %42 = vmatpush1.msra.mxu0 0.0
  %43 = vmatprep.subr.mxu0 0.0
  %44 = vmatpush1.msra.mxu0 0.0
  %45 = vmatprep.subr.mxu0 0.0
  %46 = vmatpush1.msra.mxu0 0.0
  %47 = vmatprep.subr.mxu0 0.0
  %48 = vmatpush1.msra.mxu0 0.0
  %49 = vmatprep.subr.mxu0 0.0
  %50 = vmatpush1.msra.mxu0 0.0
  %51 = vmatprep.subr.mxu0 0.0
  %52 = vmatpush1.msra.mxu0 0.0
  %53 = vmatprep.subr.mxu0 0.0
  %54 = vmatpush1.msra.mxu0 0.0
  %55 = vmatprep.subr.mxu0 0.0
  %56 = vmatpush1.msra.mxu0 0.0
  %57 = vmatprep.subr.mxu0 0.0
  %58 = vmatpush1.msra.mxu0 0.0
  %59 = vmatprep.subr.mxu0 0.0
  %60 = vmatpush1.msra.mxu0 0.0
  %61 = vmatprep.subr.mxu0 0.0
  %62 = vmatpush1.msra.mxu0 0.0
  %63 = vmatprep.subr.mxu0 0.0
  %64 = vmatpush1.msra.mxu0 0.0
  %65 = vmatprep.subr.mxu0 0.0
  %66 = vmatpush1.msra.mxu0 0.0
  %67 = vmatprep.subr.mxu0 0.0
  %68 = vmatpush1.msra.mxu0 %v35
  %69 = vmatprep.subr.mxu0 0.0
  %70 = vmatpush2.msra.mxu0 0.0
  %71 = vmatprep.subr.mxu0 0.0
  %72 = vmatpush2.msra.mxu0 0.0
  %73 = vmatprep.subr.mxu0 0.0
  %74 = vmatpush2.msra.mxu0 0.0
  %75 = vmatprep.subr.mxu0 0.0
  %76 = vmatpush2.msra.mxu0 0.0
  %77 = vmatprep.subr.mxu0 0.0
  %78 = vmatpush2.msra.mxu0 0.0
  %79 = vmatprep.subr.mxu0 0.0
  %80 = vmatpush2.msra.mxu0 0.0
  %81 = vmatprep.subr.mxu0 0.0
  %82 = vmatpush2.msra.mxu0 0.0
  %83 = vmatprep.subr.mxu0 0.0
  %84 = vmatpush2.msra.mxu0 0.0
  %85 = vmatprep.subr.mxu0 0.0
  %86 = vmatpush2.msra.mxu0 0.0
  %87 = vmatprep.subr.mxu0 0.0
  %88 = vmatpush2.msra.mxu0 0.0
  %89 = vmatprep.subr.mxu0 0.0
  %90 = vmatpush2.msra.mxu0 0.0
  %91 = vmatprep.subr.mxu0 0.0
  %92 = vmatpush2.msra.mxu0 0.0
  %93 = vmatprep.subr.mxu0 0.0
  %94 = vmatpush2.msra.mxu0 0.0
  %95 = vmatprep.subr.mxu0 0.0
  %96 = vmatpush2.msra.mxu0 0.0
  %97 = vmatprep.subr.mxu0 0.0
  %98 = vmatpush2.msra.mxu0 0.0
  %99 = vmatprep.subr.mxu0 0.0
  %100 = vmatpush2.msra.mxu0 0.0
  %101 = vmatprep.mubr.f32.mxu0 0.0
  %102 = vmatmul.mubr.f32.gmra.mxu0 %v31
  %v103 = vpop.f32.mrf.mxu0
  %v104 = vadd.f32 %v27, %v103
  %v105 = vpop.f32.mrf.mxu0
  %106 = vdwg.mxu0
  %v107 = vxor.u32 %v104, 2147483648
  %v108 = vmul.f32 %v107, 1.442695
  %v109 = vpow.pop %v108
  %v110 = vadd.f32 %v109, 1.0
  %v111 = vrcp.pop %v110
  %v112 = vmul.f32 1.0, %v111
  %v113 = vld [vmem:[%s3] sm:$0xff]
  %v114 = vld [vmem:[%s3 + $0x8] sm:$0xff]
  %v115 = vld [vmem:[%s4] sm:$0x1]
  %v117 = vlaneseq
  %v118 = vshrl.u32 %v117, 7
  %v119 = vsub.s32 0, %v118
  %v120 = vrot.slane %v115, %v119
  %vm122 = vcmask 130048
  %v124 = vsel %vm122, %v112, 0
  %126 = vmatprep.subr.mxu0 0.0
  %127 = vmatpush1.msra.mxu0 0.0
  %128 = vmatprep.subr.mxu0 0.0
  %129 = vmatpush1.msra.mxu0 0.0
  %130 = vmatprep.subr.mxu0 0.0
  %131 = vmatpush1.msra.mxu0 0.0
  %132 = vmatprep.subr.mxu0 0.0
  %133 = vmatpush1.msra.mxu0 0.0
  %134 = vmatprep.subr.mxu0 0.0
  %135 = vmatpush1.msra.mxu0 0.0
  %136 = vmatprep.subr.mxu0 0.0
  %137 = vmatpush1.msra.mxu0 0.0
  %138 = vmatprep.subr.mxu0 0.0
  %139 = vmatpush1.msra.mxu0 0.0
  %140 = vmatprep.subr.mxu0 0.0
  %141 = vmatpush1.msra.mxu0 0.0
  %142 = vmatprep.subr.mxu0 0.0
  %143 = vmatpush1.msra.mxu0 0.0
  %144 = vmatprep.subr.mxu0 0.0
  %145 = vmatpush1.msra.mxu0 0.0
  %146 = vmatprep.subr.mxu0 0.0
  %147 = vmatpush1.msra.mxu0 0.0
  %148 = vmatprep.subr.mxu0 0.0
  %149 = vmatpush1.msra.mxu0 0.0
  %150 = vmatprep.subr.mxu0 0.0
  %151 = vmatpush1.msra.mxu0 0.0
  %152 = vmatprep.subr.mxu0 0.0
  %153 = vmatpush1.msra.mxu0 0.0
  %154 = vmatprep.subr.mxu0 0.0
  %155 = vmatpush1.msra.mxu0 %v114
  %156 = vmatprep.subr.mxu0 0.0
  %157 = vmatpush1.msra.mxu0 %v113
  %158 = vmatprep.subr.mxu0 0.0
  %159 = vmatpush2.msra.mxu0 0.0
  %160 = vmatprep.subr.mxu0 0.0
  %161 = vmatpush2.msra.mxu0 0.0
  %162 = vmatprep.subr.mxu0 0.0
  %163 = vmatpush2.msra.mxu0 0.0
  %164 = vmatprep.subr.mxu0 0.0
  %165 = vmatpush2.msra.mxu0 0.0
  %166 = vmatprep.subr.mxu0 0.0
  %167 = vmatpush2.msra.mxu0 0.0
  %168 = vmatprep.subr.mxu0 0.0
  %169 = vmatpush2.msra.mxu0 0.0
  %170 = vmatprep.subr.mxu0 0.0
  %171 = vmatpush2.msra.mxu0 0.0
  %172 = vmatprep.subr.mxu0 0.0
  %173 = vmatpush2.msra.mxu0 0.0
  %174 = vmatprep.subr.mxu0 0.0
  %175 = vmatpush2.msra.mxu0 0.0
  %176 = vmatprep.subr.mxu0 0.0
  %177 = vmatpush2.msra.mxu0 0.0
  %178 = vmatprep.subr.mxu0 0.0
  %179 = vmatpush2.msra.mxu0 0.0
  %180 = vmatprep.subr.mxu0 0.0
  %181 = vmatpush2.msra.mxu0 0.0
  %182 = vmatprep.subr.mxu0 0.0
  %183 = vmatpush2.msra.mxu0 0.0
  %184 = vmatprep.subr.mxu0 0.0
  %185 = vmatpush2.msra.mxu0 0.0
  %186 = vmatprep.subr.mxu0 0.0
  %187 = vmatpush2.msra.mxu0 0.0
  %188 = vmatprep.subr.mxu0 0.0
  %189 = vmatpush2.msra.mxu0 0.0
  %190 = vmatprep.mubr.f32.mxu0 0.0
  %191 = vmatmul.mubr.f32.gmra.mxu0 %v124
  %v192 = vpop.f32.mrf.mxu0
  %v193 = vadd.f32 %v120, %v192
  %v194 = vpop.f32.mrf.mxu0
  %195 = vdwg.mxu0
  %vm196 = vcmask 23552
  %v197 = vsel %vm196, %v193, -inf
  %198 = vmax.xlane.f32.xlu0 %v197
  %v199 = vpop.xlane.xlu0 %198
  %v200 = vsub.f32 %v193, %v199
  %v201 = vmul.f32 %v200, 1.442695
  %v202 = vpow.pop %v201
  %v203 = vsel %vm196, %v202, 0.0
  %204 = vadd.xlane.f32.xlu0 %v203
  %v205 = vpop.xlane.xlu0 %204
  %v206 = vrcp.pop %v205
  %v207 = vmul.f32 %v202, %v206
  %208 = vst.msk [vmem:[%s5] sm:$0xff] %vm196, %v207
  // Predicated region
  $region22: #{tpu_custom_call.1} parent=0 // pred_check
    _
  $region23: #{tpu_custom_call.1} parent=0 // pred_check_branch
    %210 = sbr.rel (0) target = $region25
  $region24: #{tpu_custom_call.1} parent=0 // pred_region
    _
  $region25: #{tpu_custom_call.1} parent=0 // pred_fallthru
    _
  // Predicated region
  $region26: #{tpu_custom_call.1} parent=0 // pred_check
    _
  $region27: #{tpu_custom_call.1} parent=0 // pred_check_branch
    %212 = sbr.rel (0) target = $region29
  $region28: #{tpu_custom_call.1} parent=0 // pred_region
    _
  $region29: #{tpu_custom_call.1} parent=0 // pred_fallthru
    _

</llo_original>
